<compile_context>
chip_gen: v5e
topology: v5e:2x2
jax: 0.10.0
libtpu: 0.0.40
codegen_flags: <defaults>
</compile_context>

<pallas_src>
import functools

import jax
import jax.numpy as jnp
from jax.experimental import pallas as pl
from jax.experimental.pallas import tpu as pltpu

CONTEXT_SIZE = 2
EMBEDDING_DIM = 32   # small synthetic embedding dim
HIDDEN_DIM = 128     # linear1 output size, fixed by the module

raw_text = (
    'We are about to study the idea of a computational process.\n'
    'Computational processes are abstract beings that inhabit computers.\n'
    'As they evolve, processes manipulate other abstract things called data.\n'
    'The evolution of a process is directed by a pattern of rules\n'
    'called a program. People create programs to direct processes. In effect,\n'
    'we conjure the spirits of the computer with our spells.'
).split()

vocab = sorted(set(raw_text))          # sorted -> deterministic word<->index map
vocab_size = len(vocab)
word_to_ix = {w: i for i, w in enumerate(vocab)}


def ngram_kernel(idx_ref, fused_ref, b1_ref, w2t_ref, b2_ref, out_ref):
    """One batch tile of the NGram forward.

    idx_ref   : VMEM (TB, C)        int32 -- context word indices
    fused_ref : VMEM (C*Vpad, H)    bf16  -- emb@W1_c^T fused tables, stacked over c
    b1_ref    : VMEM (1, H)         f32   -- linear1 bias
    w2t_ref   : VMEM (H, Vpad)      bf16  -- linear2 weight, transposed, cols zero-padded
    b2_ref    : VMEM (1, Vpad)      f32   -- linear2 bias, padded lanes = -1e30
    out_ref   : VMEM (TB, Vpad)     f32   -- log-probs (padded lanes garbage)
    """
    idx = idx_ref[...]                                        # (TB, C) int32
    tb, c_size = idx.shape
    cvpad, _ = fused_ref.shape
    vpad = cvpad // c_size

    # Block one-hot over C*Vpad lanes: lane c*Vpad + idx[:, c] is hot for each
    # context position. Exact in bf16 (values are 0/1), feeds one MXU matmul.
    lane = jax.lax.broadcasted_iota(jnp.int32, (tb, cvpad), 1)
    hit = lane == idx[:, 0:1]
    for c in range(1, c_size):
        hit = hit | (lane == idx[:, c:c + 1] + c * vpad)
    onehot = hit.astype(jnp.bfloat16)                         # (TB, C*Vpad)

    # Fused embedding-gather + linear1: single 256-deep MXU contraction.
    pre = jnp.dot(onehot, fused_ref[...],
                  preferred_element_type=jnp.float32)         # (TB, H) f32
    h = jnp.maximum(pre + b1_ref[...], 0.0)                   # ReLU(linear1), f32

    # Linear2 on the MXU in bf16, accumulate f32, bias/padding in f32.
    logits = jnp.dot(h.astype(jnp.bfloat16), w2t_ref[...],
                     preferred_element_type=jnp.float32) + b2_ref[...]  # (TB, Vpad)

    # Numerically stable log-softmax over lanes; padded lanes carry -1e30 logits,
    # so they contribute 0 to the sum and never win the max.
    m = jnp.max(logits, axis=1, keepdims=True)
    s = logits - m
    lse = jnp.log(jnp.sum(jnp.exp(s), axis=1, keepdims=True))
    out_ref[...] = (s - lse).astype(out_ref.dtype)


def prepare_params(emb_table, w1, b1, w2, b2, context_size):
    """One-time layout prep (call once and reuse): fuse Embedding+Linear1,
    transpose/pad Linear2, cast MXU operands to bf16."""
    V, D = emb_table.shape
    H = w1.shape[0]
    Vpad = ((V + 127) // 128) * 128

    emb_pad = jnp.zeros((Vpad, D), jnp.float32).at[:V, :].set(emb_table)
    # T_c = emb_pad @ W1[:, c*D:(c+1)*D]^T  -> (Vpad, H); stack over c -> (C*Vpad, H)
    tables = [emb_pad @ jnp.asarray(w1[:, c * D:(c + 1) * D], jnp.float32).T
              for c in range(context_size)]
    fused = jnp.concatenate(tables, axis=0).astype(jnp.bfloat16)       # (C*Vpad, H)

    b1r = jnp.asarray(b1, jnp.float32).reshape(1, H)
    w2t_pad = (jnp.zeros((H, Vpad), jnp.float32).at[:, :V].set(w2.T)
               .astype(jnp.bfloat16))                                  # (H, Vpad)
    b2_pad = jnp.full((1, Vpad), -1e30, jnp.float32).at[0, :V].set(b2)
    return fused, b1r, w2t_pad, b2_pad


@functools.partial(jax.jit, static_argnames=("block_b",))
def ngram_forward(idx_batch, fused, b1r, w2t_pad, b2_pad, *, block_b=128):
    """idx_batch: (B, C) int32, B a multiple of block_b.
    Returns the padded (B, Vpad) f32 log-prob slab; real log-probs live in
    lanes [0, vocab_size) -- the consumer indexes what it needs (no extra
    full-array slice pass here)."""
    B, C = idx_batch.shape
    CVpad, H = fused.shape
    Vpad = w2t_pad.shape[1]
    assert B % block_b == 0, "batch must be a multiple of the batch tile"

    return pl.pallas_call(
        ngram_kernel,
        out_shape=jax.ShapeDtypeStruct((B, Vpad), jnp.float32),
        grid_spec=pltpu.PrefetchScalarGridSpec(
            num_scalar_prefetch=0,
            grid=(B // block_b,),
            in_specs=[
                pl.BlockSpec((block_b, C), lambda i: (i, 0)),    # context indices
                pl.BlockSpec((CVpad, H), lambda i: (0, 0)),      # fused emb@W1^T (bf16)
                pl.BlockSpec((1, H), lambda i: (0, 0)),          # b1 (f32)
                pl.BlockSpec((H, Vpad), lambda i: (0, 0)),       # W2^T (bf16, lane padded)
                pl.BlockSpec((1, Vpad), lambda i: (0, 0)),       # b2 (f32, pad = -1e30)
            ],
            out_specs=pl.BlockSpec((block_b, Vpad), lambda i: (i, 0)),
        ),
        compiler_params=pltpu.CompilerParams(
            dimension_semantics=("parallel",)),                  # 2 tiles -> both v7x TCs
    )(idx_batch, fused, b1r, w2t_pad, b2_pad)


def ngram_reference(idx_batch, emb_table, w1, b1, w2, b2):
    """Pure-JAX f32 reference: the PyTorch forward, stacked over the batch."""
    B = idx_batch.shape[0]
    embeds = emb_table[idx_batch].reshape(B, -1)               # (B, C*D)
    h = jax.nn.relu(embeds @ w1.T + b1[None, :])               # (B, H)
    logits = h @ w2.T + b2[None, :]                            # (B, V)
    return jax.nn.log_softmax(logits, axis=1)


if __name__ == "__main__":
    key = jax.random.PRNGKey(0)
    k_emb, k_w1, k_b1, k_w2, k_b2 = jax.random.split(key, 5)

    V, D, H, C = vocab_size, EMBEDDING_DIM, HIDDEN_DIM, CONTEXT_SIZE
    in_dim = C * D

    # Deterministic init matching torch defaults:
    #   Embedding ~ N(0,1); Linear ~ U(-1/sqrt(fan_in), 1/sqrt(fan_in))
    emb_table = jax.random.normal(k_emb, (V, D), dtype=jnp.float32)
    bd1 = 1.0 / (in_dim ** 0.5)
    w1 = jax.random.uniform(k_w1, (H, in_dim), jnp.float32, -bd1, bd1)
    b1 = jax.random.uniform(k_b1, (H,), jnp.float32, -bd1, bd1)
    bd2 = 1.0 / (H ** 0.5)
    w2 = jax.random.uniform(k_w2, (V, H), jnp.float32, -bd2, bd2)
    b2 = jax.random.uniform(k_b2, (V,), jnp.float32, -bd2, bd2)

    # Build every (w_i, w_{i+1}) n-gram context in the text; pad the batch up to
    # at least 2 full 128-row tiles (grid=(2,) keeps both v7x TCs busy and fills
    # MXU rows on v5e/v6e), repeating the last context for the padding rows.
    contexts = [[word_to_ix[raw_text[i]], word_to_ix[raw_text[i + 1]]]
                for i in range(len(raw_text) - C)]
    block_b = 128
    n_real = len(contexts)
    n_tiles = max(2, -(-n_real // block_b))
    B = n_tiles * block_b
    contexts = contexts + [contexts[-1]] * (B - n_real)
    idx_batch = jnp.asarray(contexts, dtype=jnp.int32)          # (B, 2)

    # Layout prep once (cacheable); the jitted forward reuses the prepared params.
    fused, b1r, w2t_pad, b2_pad = prepare_params(emb_table, w1, b1, w2, b2, C)

    out_pad = ngram_forward(idx_batch, fused, b1r, w2t_pad, b2_pad, block_b=block_b)
    out_pad = jax.block_until_ready(out_pad)

    # Consumer-side indexing: real contexts are rows [:n_real], real words lanes [:V].
    out = out_pad[:n_real, :V]
    ref = ngram_reference(idx_batch, emb_table, w1, b1, w2, b2)[:n_real]

    assert out.shape == (n_real, V)
    assert bool(jnp.all(jnp.isfinite(out)))
    max_err = float(jnp.max(jnp.abs(out - ref)))
    # bf16 MXU operands (f32 accumulation + f32 softmax) vs the pure-f32 reference.
    assert jnp.allclose(out, ref, atol=3e-2, rtol=3e-2), \
        f"mismatch vs reference, max err={max_err}"

    print("KERNEL_OK")
</pallas_src>

<mosaic_0001>
module attributes {stable_mosaic.version = 11 : i64} {
  func.func @ngram_kernel(%arg0: i32, %arg1: memref<128x2xi32, #tpu.memory_space<vmem>>, %arg2: memref<256x128xbf16, #tpu.memory_space<vmem>>, %arg3: memref<1x128xf32, #tpu.memory_space<vmem>>, %arg4: memref<128x128xbf16, #tpu.memory_space<vmem>>, %arg5: memref<1x128xf32, #tpu.memory_space<vmem>>, %arg6: memref<128x128xf32, #tpu.memory_space<vmem>>) attributes {dimension_semantics = [#tpu.dimension_semantics<parallel>], iteration_bounds = array<i64: 2>, scalar_prefetch = 0 : i64, scratch_operands = 0 : i64, tpu.core_type = #tpu.core_type<tc>, window_params = [{transform_indices = @transform_0, window_bounds = array<i64: 128, 2>}, {pipeline_mode = #tpu.pipeline_mode<synchronous>, transform_indices = @transform_1, window_bounds = array<i64: 256, 128>}, {pipeline_mode = #tpu.pipeline_mode<synchronous>, transform_indices = @transform_2, window_bounds = array<i64: 1, 128>}, {pipeline_mode = #tpu.pipeline_mode<synchronous>, transform_indices = @transform_3, window_bounds = array<i64: 128, 128>}, {pipeline_mode = #tpu.pipeline_mode<synchronous>, transform_indices = @transform_4, window_bounds = array<i64: 1, 128>}, {transform_indices = @transform_5, window_bounds = array<i64: 128, 128>}]} {
    %c0 = arith.constant 0 : index
    %c0_0 = arith.constant 0 : index
    %0 = vector.load %arg1[%c0, %c0_0] : memref<128x2xi32, #tpu.memory_space<vmem>>, vector<128x2xi32>
    %1 = tpu.iota {dimensions = array<i32: 1>} : vector<128x256xi32>
    %2 = vector.extract_strided_slice %0 {offsets = [0, 0], sizes = [128, 1], strides = [1, 1]} : vector<128x2xi32> to vector<128x1xi32>
    %3 = vector.broadcast %2 : vector<128x1xi32> to vector<128x256xi32>
    %4 = arith.cmpi eq, %1, %3 : vector<128x256xi32>
    %5 = vector.extract_strided_slice %0 {offsets = [0, 1], sizes = [128, 1], strides = [1, 1]} : vector<128x2xi32> to vector<128x1xi32>
    %c128_i32 = arith.constant 128 : i32
    %6 = vector.broadcast %c128_i32 : i32 to vector<128x1xi32>
    %7 = arith.addi %5, %6 : vector<128x1xi32>
    %8 = vector.broadcast %7 : vector<128x1xi32> to vector<128x256xi32>
    %9 = arith.cmpi eq, %1, %8 : vector<128x256xi32>
    %10 = arith.ori %4, %9 : vector<128x256xi1>
    %11 = arith.extui %10 : vector<128x256xi1> to vector<128x256xi32>
    %12 = arith.sitofp %11 : vector<128x256xi32> to vector<128x256xf32>
    %13 = arith.truncf %12 : vector<128x256xf32> to vector<128x256xbf16>
    %c0_1 = arith.constant 0 : index
    %c0_2 = arith.constant 0 : index
    %14 = vector.load %arg2[%c0_1, %c0_2] : memref<256x128xbf16, #tpu.memory_space<vmem>>, vector<256x128xbf16>
    %cst = arith.constant dense<0.000000e+00> : vector<128x128xf32>
    %15 = tpu.matmul %13, %14, %cst {dimension_numbers = #tpu.dot_dimension_numbers<[1], [0], [0], [1], [0, 0, 1, 1], [], []>} : vector<128x256xbf16>, vector<256x128xbf16>, vector<128x128xf32> -> vector<128x128xf32>
    %c0_3 = arith.constant 0 : index
    %c0_4 = arith.constant 0 : index
    %16 = vector.load %arg3[%c0_3, %c0_4] : memref<1x128xf32, #tpu.memory_space<vmem>>, vector<1x128xf32>
    %17 = vector.broadcast %16 : vector<1x128xf32> to vector<128x128xf32>
    %18 = arith.addf %15, %17 : vector<128x128xf32>
    %cst_5 = arith.constant 0.000000e+00 : f32
    %19 = vector.broadcast %cst_5 : f32 to vector<128x128xf32>
    %20 = arith.maximumf %18, %19 : vector<128x128xf32>
    %21 = arith.truncf %20 : vector<128x128xf32> to vector<128x128xbf16>
    %c0_6 = arith.constant 0 : index
    %c0_7 = arith.constant 0 : index
    %22 = vector.load %arg4[%c0_6, %c0_7] : memref<128x128xbf16, #tpu.memory_space<vmem>>, vector<128x128xbf16>
    %cst_8 = arith.constant dense<0.000000e+00> : vector<128x128xf32>
    %23 = tpu.matmul %21, %22, %cst_8 {dimension_numbers = #tpu.dot_dimension_numbers<[1], [0], [0], [1], [0, 0, 1, 1], [], []>} : vector<128x128xbf16>, vector<128x128xbf16>, vector<128x128xf32> -> vector<128x128xf32>
    %c0_9 = arith.constant 0 : index
    %c0_10 = arith.constant 0 : index
    %24 = vector.load %arg5[%c0_9, %c0_10] : memref<1x128xf32, #tpu.memory_space<vmem>>, vector<1x128xf32>
    %25 = vector.broadcast %24 : vector<1x128xf32> to vector<128x128xf32>
    %26 = arith.addf %23, %25 : vector<128x128xf32>
    %cst_11 = arith.constant dense<0xFF800000> : vector<128xf32>
    %27 = vector.multi_reduction <maximumf>, %26, %cst_11 [1] : vector<128x128xf32> to vector<128xf32>
    %28 = vector.shape_cast %27 : vector<128xf32> to vector<128x1xf32>
    %29 = vector.broadcast %28 : vector<128x1xf32> to vector<128x128xf32>
    %30 = arith.subf %26, %29 : vector<128x128xf32>
    %31 = math.exp %30 : vector<128x128xf32>
    %cst_12 = arith.constant dense<0.000000e+00> : vector<128xf32>
    %32 = vector.multi_reduction <add>, %31, %cst_12 [1] : vector<128x128xf32> to vector<128xf32>
    %33 = vector.shape_cast %32 : vector<128xf32> to vector<128x1xf32>
    %34 = math.log %33 : vector<128x1xf32>
    %35 = vector.broadcast %34 : vector<128x1xf32> to vector<128x128xf32>
    %36 = arith.subf %30, %35 : vector<128x128xf32>
    %c0_13 = arith.constant 0 : index
    %c0_14 = arith.constant 0 : index
    %37 = vector.load %arg6[%c0_13, %c0_14] : memref<128x128xf32, #tpu.memory_space<vmem>>, vector<128x128xf32>
    tpu.vector_store %arg6[%c0_13, %c0_14], %36 {strides = array<i32>} : memref<128x128xf32, #tpu.memory_space<vmem>>, vector<128x128xf32>,
    return
  }
  func.func @transform_0(%arg0: i32) -> (i32, i32) {
    %c0_i32 = arith.constant 0 : i32
    %c0_i32_0 = arith.constant 0 : i32
    return %arg0, %c0_i32 : i32, i32
  }
  func.func @transform_1(%arg0: i32) -> (i32, i32) {
    %c0_i32 = arith.constant 0 : i32
    %c0_i32_0 = arith.constant 0 : i32
    %c0_i32_1 = arith.constant 0 : i32
    return %c0_i32, %c0_i32_0 : i32, i32
  }
  func.func @transform_2(%arg0: i32) -> (i32, i32) {
    %c0_i32 = arith.constant 0 : i32
    %c0_i32_0 = arith.constant 0 : i32
    %c0_i32_1 = arith.constant 0 : i32
    return %c0_i32, %c0_i32_0 : i32, i32
  }
  func.func @transform_3(%arg0: i32) -> (i32, i32) {
    %c0_i32 = arith.constant 0 : i32
    %c0_i32_0 = arith.constant 0 : i32
    %c0_i32_1 = arith.constant 0 : i32
    return %c0_i32, %c0_i32_0 : i32, i32
  }
  func.func @transform_4(%arg0: i32) -> (i32, i32) {
    %c0_i32 = arith.constant 0 : i32
    %c0_i32_0 = arith.constant 0 : i32
    %c0_i32_1 = arith.constant 0 : i32
    return %c0_i32, %c0_i32_0 : i32, i32
  }
  func.func @transform_5(%arg0: i32) -> (i32, i32) {
    %c0_i32 = arith.constant 0 : i32
    %c0_i32_0 = arith.constant 0 : i32
    return %arg0, %c0_i32 : i32, i32
  }
}

</mosaic_0001>

<llo_original>
// kernel: ngram_forward.1
$region0: #{ngram_forward.1}
  #allocation0 [shape = 'u32[]', space=smem, size = 0x4, offset = 0x4, fixed_abs, tag = 'smem constant byte address 0x4 - core index']
  #allocation1 [shape = 'u32[72,128]{1,0:T(1,128)}', space=vmem, size = 0x9000, scoped, tag = 'internal scratch']
  %s0 = inlined_call_operand.vmem [shape: s32[256,2], index: 0, kind: input, shape index: {}]
  %s1 = inlined_call_operand.vmem [shape: bf16[256,128], index: 1, kind: input, shape index: {}]
  %s2 = inlined_call_operand.vmem [shape: f32[1,128], index: 2, kind: input, shape index: {}]
  %s3 = inlined_call_operand.vmem [shape: bf16[128,128], index: 3, kind: input, shape index: {}]
  %s4 = inlined_call_operand.vmem [shape: f32[1,128], index: 4, kind: input, shape index: {}]
  %s5 = inlined_call_operand.hbm [shape: f32[256,128], index: 5, kind: output, shape index: {}]
  %s6 = sld [smem:[#allocation0]]
  $region53: #{ngram_forward.1} parent=0
    _
  %s8 = ssub.s32 1, %s6
  %s9 = scalar_select 0, %s8, %s6
  $region1: #{ngram_forward.1} parent=0
    #allocation2 [shape = 'u8[131072]{0}', space=vmem, size = 0x20000, scoped, tag = 'output window, operand 0']
    #allocation3 [shape = 's32[2]{0}', space=sflag, size = 0x8, scoped, tag = 'scoped memory for ngram_forward.1']
    %10 = vsyncpa [#allocation3], 0
    %s11 = scalar_lea.sflag [#allocation3], 1
    %12 = vsyncpa %s11, 0
    loop: start=0, step=1, limit=4
    $region2: #{ngram_forward.1} parent=1 // loop_pre_header
      _
    $region3: #{ngram_forward.1} parent=1 // loop_header
      %s14 = sphi 0, %s18
      %p15 = scmp.ge.s32.totalorder %s14, 4
      %s24 = sphi 0, %s26
      %s27 = sphi 0, %s24
      %s28 = sphi 0, %s27
      %s44 = sphi 0, %s28
      %s48 = sphi 0, %s48
      %s50 = sphi 0, %s48
      %s51 = sphi 0, %s50
      %s65 = sphi 0, %s51
      %s69 = sphi 0, %s69
      %s71 = sphi 0, %s69
      %s72 = sphi 0, %s71
      %s86 = sphi 0, %s72
      %s90 = sphi 0, %s90
      %s92 = sphi 0, %s90
      %s93 = sphi 0, %s92
      %s107 = sphi 0, %s93
      %s111 = sphi 0, %s111
      %s113 = sphi 0, %s111
      %s114 = sphi 0, %s113
      %s128 = sphi 0, %s114
      %s134 = sphi 0, %s136
      %s137 = sphi 0, %s134
      %s138 = sphi 0, %s137
      %s154 = sphi 0, %s138
    $region4: #{ngram_forward.1} parent=1 // loop_header_branch
      %17 = sbr.rel (%p15) target = $region8
    $region5: #{ngram_forward.1} parent=1 // loop_body
      %s19 = ssub.s32 %s14, 1
      %s20 = ssub.s32 %s14, 2
      %s21 = sadd.s32 %s14, 1
      %s22 = ssub.s32 %s14, %s21
      %p23 = scmp.eq.s32.totalorder %s22, 0
      %s25 = sadd.s32 %s24, 1
      %s26 = scalar_select %p23, %s24, %s25
      %p29 = pneg %p23
      %p30 = scmp.eq.s32.totalorder %s14, 1
      %p31 = por %p29, %p30
      %p32 = scmp.ne.s32.totalorder %s24, %s27
      %p33 = scmp.eq.s32.totalorder %s14, 0
      %p34 = por %p32, %p33
      %p35 = scmp.ne.s32.totalorder %s24, %s27
      %p36 = scmp.eq.s32.totalorder %s19, 1
      %p37 = por %p35, %p36
      %p38 = scmp.ne.s32.totalorder %s27, %s28
      %p39 = scmp.eq.s32.totalorder %s19, 0
      %p40 = por %p38, %p39
      %p41 = scmp.ne.s32.totalorder %s27, %s28
      %p42 = scmp.eq.s32.totalorder %s20, 1
      %p43 = por %p41, %p42
      %p45 = scmp.ne.s32.totalorder %s28, %s44
      %p46 = scmp.eq.s32.totalorder %s20, 0
      %p47 = por %p45, %p46
      %s49 = sadd.s32 %s48, 1
      %p52 = scmp.eq.s32.totalorder %s14, 1
      %p53 = scmp.ne.s32.totalorder %s48, %s50
      %p54 = scmp.eq.s32.totalorder %s14, 0
      %p55 = por %p53, %p54
      %p56 = scmp.ne.s32.totalorder %s48, %s50
      %p57 = scmp.eq.s32.totalorder %s19, 1
      %p58 = por %p56, %p57
      %p59 = scmp.ne.s32.totalorder %s50, %s51
      %p60 = scmp.eq.s32.totalorder %s19, 0
      %p61 = por %p59, %p60
      %p62 = scmp.ne.s32.totalorder %s50, %s51
      %p63 = scmp.eq.s32.totalorder %s20, 1
      %p64 = por %p62, %p63
      %p66 = scmp.ne.s32.totalorder %s51, %s65
      %p67 = scmp.eq.s32.totalorder %s20, 0
      %p68 = por %p66, %p67
      %s70 = sadd.s32 %s69, 1
      %p73 = scmp.eq.s32.totalorder %s14, 1
      %p74 = scmp.ne.s32.totalorder %s69, %s71
      %p75 = scmp.eq.s32.totalorder %s14, 0
      %p76 = por %p74, %p75
      %p77 = scmp.ne.s32.totalorder %s69, %s71
      %p78 = scmp.eq.s32.totalorder %s19, 1
      %p79 = por %p77, %p78
      %p80 = scmp.ne.s32.totalorder %s71, %s72
      %p81 = scmp.eq.s32.totalorder %s19, 0
      %p82 = por %p80, %p81
      %p83 = scmp.ne.s32.totalorder %s71, %s72
      %p84 = scmp.eq.s32.totalorder %s20, 1
      %p85 = por %p83, %p84
      %p87 = scmp.ne.s32.totalorder %s72, %s86
      %p88 = scmp.eq.s32.totalorder %s20, 0
      %p89 = por %p87, %p88
      %s91 = sadd.s32 %s90, 1
      %p94 = scmp.eq.s32.totalorder %s14, 1
      %p95 = scmp.ne.s32.totalorder %s90, %s92
      %p96 = scmp.eq.s32.totalorder %s14, 0
      %p97 = por %p95, %p96
      %p98 = scmp.ne.s32.totalorder %s90, %s92
      %p99 = scmp.eq.s32.totalorder %s19, 1
      %p100 = por %p98, %p99
      %p101 = scmp.ne.s32.totalorder %s92, %s93
      %p102 = scmp.eq.s32.totalorder %s19, 0
      %p103 = por %p101, %p102
      %p104 = scmp.ne.s32.totalorder %s92, %s93
      %p105 = scmp.eq.s32.totalorder %s20, 1
      %p106 = por %p104, %p105
      %p108 = scmp.ne.s32.totalorder %s93, %s107
      %p109 = scmp.eq.s32.totalorder %s20, 0
      %p110 = por %p108, %p109
      %s112 = sadd.s32 %s111, 1
      %p115 = scmp.eq.s32.totalorder %s14, 1
      %p116 = scmp.ne.s32.totalorder %s111, %s113
      %p117 = scmp.eq.s32.totalorder %s14, 0
      %p118 = por %p116, %p117
      %p119 = scmp.ne.s32.totalorder %s111, %s113
      %p120 = scmp.eq.s32.totalorder %s19, 1
      %p121 = por %p119, %p120
      %p122 = scmp.ne.s32.totalorder %s113, %s114
      %p123 = scmp.eq.s32.totalorder %s19, 0
      %p124 = por %p122, %p123
      %p125 = scmp.ne.s32.totalorder %s113, %s114
      %p126 = scmp.eq.s32.totalorder %s20, 1
      %p127 = por %p125, %p126
      %p129 = scmp.ne.s32.totalorder %s114, %s128
      %p130 = scmp.eq.s32.totalorder %s20, 0
      %p131 = por %p129, %p130
      %s132 = ssub.s32 %s14, %s21
      %p133 = scmp.eq.s32.totalorder %s132, 0
      %s135 = sadd.s32 %s134, 1
      %s136 = scalar_select %p133, %s134, %s135
      %p139 = pneg %p133
      %p140 = scmp.eq.s32.totalorder %s14, 1
      %p141 = por %p139, %p140
      %p142 = scmp.ne.s32.totalorder %s134, %s137
      %p143 = scmp.eq.s32.totalorder %s14, 0
      %p144 = por %p142, %p143
      %p145 = scmp.ne.s32.totalorder %s134, %s137
      %p146 = scmp.eq.s32.totalorder %s19, 1
      %p147 = por %p145, %p146
      %p148 = scmp.ne.s32.totalorder %s137, %s138
      %p149 = scmp.eq.s32.totalorder %s19, 0
      %p150 = por %p148, %p149
      %p151 = scmp.ne.s32.totalorder %s137, %s138
      %p152 = scmp.eq.s32.totalorder %s20, 1
      %p153 = por %p151, %p152
      %p155 = scmp.ne.s32.totalorder %s138, %s154
      %p156 = scmp.eq.s32.totalorder %s20, 0
      %p157 = por %p155, %p156
      %p158 = scmp.le.s32.totalorder 1, %s14
      %p159 = scmp.lt.s32.totalorder %s14, 3
      %p160 = pnand %p158, %p159
      %p161 = pneg %p160
      // Predicated region
      $region9: #{ngram_forward.1} parent=5 // pred_check
        _
      $region10: #{ngram_forward.1} parent=5 // pred_check_branch
        %163 = sbr.rel (%p160) target = $region12
      $region11: #{ngram_forward.1} parent=5 // pred_region
        %s164 = ssub.s32 %s14, 1
        // Predicated region
        $region13: #{ngram_forward.1} parent=11 // pred_check
          %p165 = pneg %p61
        $region14: #{ngram_forward.1} parent=11 // pred_check_branch
          %167 = sbr.rel (%p165) target = $region16
        $region15: #{ngram_forward.1} parent=11 // pred_region
          _
        $region16: #{ngram_forward.1} parent=11 // pred_fallthru
          _
        // Predicated region
        $region17: #{ngram_forward.1} parent=11 // pred_check
          %p168 = pneg %p82
        $region18: #{ngram_forward.1} parent=11 // pred_check_branch
          %170 = sbr.rel (%p168) target = $region20
        $region19: #{ngram_forward.1} parent=11 // pred_region
          _
        $region20: #{ngram_forward.1} parent=11 // pred_fallthru
          _
        // Predicated region
        $region21: #{ngram_forward.1} parent=11 // pred_check
          %p171 = pneg %p103
        $region22: #{ngram_forward.1} parent=11 // pred_check_branch
          %173 = sbr.rel (%p171) target = $region24
        $region23: #{ngram_forward.1} parent=11 // pred_region
          _
        $region24: #{ngram_forward.1} parent=11 // pred_fallthru
          _
        // Predicated region
        $region25: #{ngram_forward.1} parent=11 // pred_check
          %p174 = pneg %p124
        $region26: #{ngram_forward.1} parent=11 // pred_check_branch
          %176 = sbr.rel (%p174) target = $region28
        $region27: #{ngram_forward.1} parent=11 // pred_region
          _
        $region28: #{ngram_forward.1} parent=11 // pred_fallthru
          _
      $region12: #{ngram_forward.1} parent=5 // pred_fallthru
        _
      %p177 = scmp.lt.s32.totalorder %s14, 2
      // Predicated region
      $region29: #{ngram_forward.1} parent=5 // pred_check
        %p178 = pneg %p177
      $region30: #{ngram_forward.1} parent=5 // pred_check_branch
        %180 = sbr.rel (%p178) target = $region32
      $region31: #{ngram_forward.1} parent=5 // pred_region
        // Predicated region
        $region33: #{ngram_forward.1} parent=31 // pred_check
          %p181 = pneg %p34
        $region34: #{ngram_forward.1} parent=31 // pred_check_branch
          %183 = sbr.rel (%p181) target = $region36
        $region35: #{ngram_forward.1} parent=31 // pred_region
          %s184 = smul.u32 16, %s14
          %p185 = scmp.lt.s32.totalorder %s184, 31
          %s186 = scalar_select %p185, %s184, 31
          %s187 = smul.addr %s186, 8
          %s188 = scalar_lea.vmem %s0, %s187
          %s189 = smul.u32 16, %s14
        $region36: #{ngram_forward.1} parent=31 // pred_fallthru
          _
      $region32: #{ngram_forward.1} parent=5 // pred_fallthru
        _
      %p190 = scmp.le.s32.totalorder 1, %s14
      %p191 = scmp.lt.s32.totalorder %s14, 3
      %p192 = pnand %p190, %p191
      %p193 = pneg %p192
      // Predicated region
      $region37: #{ngram_forward.1} parent=5 // pred_check
        _
      $region38: #{ngram_forward.1} parent=5 // pred_check_branch
        %195 = sbr.rel (%p192) target = $region40
      $region39: #{ngram_forward.1} parent=5 // pred_region
        %s196 = ssub.s32 %s14, 1
        %s197 = smul.u32 16, %s19
        %p198 = scmp.lt.s32.totalorder %s197, 31
        %s199 = scalar_select %p198, %s197, 31
        %s200 = smul.addr %s199, 8
        %s201 = scalar_lea.vmem %s0, %s200
        %p202 = pneg %p40
        %p203 = pneg %p37
        %p204 = pneg %p61
        %p205 = pneg %p58
        %p206 = pneg %p82
        %p207 = pneg %p79
        %p208 = pneg %p103
        %p209 = pneg %p100
        %p210 = pneg %p124
        %p211 = pneg %p121
        %p212 = pneg %p150
        %p213 = pneg %p147
        %s214 = sand.u32 %s137, 1
        %s215 = scalar_lea.sflag [#allocation3], %s214
        %s216 = sand.u32 %s137, 1
        %s217 = smul.addr %s216, 128
        %s218 = scalar_lea.vmem [#allocation2], %s217
        %s219 = smul.u32 16, %s19
        %p220 = scmp.lt.s32.totalorder %s219, 31
        %s221 = scalar_select %p220, %s219, 31
        %s222 = smul.addr %s221, 8
        %s223 = scalar_lea.vmem %s0, %s222
        %s224 = smul.u32 16, %s19
        %s225 = smul.u32 16, %s19
        %v226 = vld [vmem:[%s223] sm:$0xff]
        %v227 = vld [vmem:[%s223 + $0x8] sm:$0xff]
        %v228 = vld [vmem:[%s223 + $0x10] sm:$0xff]
        %v229 = vld [vmem:[%s223 + $0x18] sm:$0xff]
        %v230 = vld [vmem:[%s223 + $0x20] sm:$0xff]
        %v231 = vld [vmem:[%s223 + $0x28] sm:$0xff]
        %v232 = vld [vmem:[%s223 + $0x30] sm:$0xff]
        %v233 = vld [vmem:[%s223 + $0x38] sm:$0xff]
        %v234 = vld [vmem:[%s223 + $0x40] sm:$0xff]
        %v235 = vld [vmem:[%s223 + $0x48] sm:$0xff]
        %v236 = vld [vmem:[%s223 + $0x50] sm:$0xff]
        %v237 = vld [vmem:[%s223 + $0x58] sm:$0xff]
        %v238 = vld [vmem:[%s223 + $0x60] sm:$0xff]
        %v239 = vld [vmem:[%s223 + $0x68] sm:$0xff]
        %v240 = vld [vmem:[%s223 + $0x70] sm:$0xff]
        %v241 = vld [vmem:[%s223 + $0x78] sm:$0xff]
        %v242 = vlaneseq
        %v243 = vand.u32 %v242, 127
        %v244 = vadd.s32 %v243, 128
        %245 = vset.pattern.permute.xlu0 0
        %246 = vperm.xlu0 %245, %v226
        %v247 = vpop.permute.xlu0 %246
        %248 = vset.pattern.permute.xlu0 0
        %249 = vperm.xlu0 %248, %v227
        %v250 = vpop.permute.xlu0 %249
        %251 = vset.pattern.permute.xlu0 0
        %252 = vperm.xlu0 %251, %v228
        %v253 = vpop.permute.xlu0 %252
        %254 = vset.pattern.permute.xlu0 0
        %255 = vperm.xlu0 %254, %v229
        %v256 = vpop.permute.xlu0 %255
        %257 = vset.pattern.permute.xlu0 0
        %258 = vperm.xlu0 %257, %v230
        %v259 = vpop.permute.xlu0 %258
        %260 = vset.pattern.permute.xlu0 0
        %261 = vperm.xlu0 %260, %v231
        %v262 = vpop.permute.xlu0 %261
        %263 = vset.pattern.permute.xlu0 0
        %264 = vperm.xlu0 %263, %v232
        %v265 = vpop.permute.xlu0 %264
        %266 = vset.pattern.permute.xlu0 0
        %267 = vperm.xlu0 %266, %v233
        %v268 = vpop.permute.xlu0 %267
        %269 = vset.pattern.permute.xlu0 0
        %270 = vperm.xlu0 %269, %v234
        %v271 = vpop.permute.xlu0 %270
        %272 = vset.pattern.permute.xlu0 0
        %273 = vperm.xlu0 %272, %v235
        %v274 = vpop.permute.xlu0 %273
        %275 = vset.pattern.permute.xlu0 0
        %276 = vperm.xlu0 %275, %v236
        %v277 = vpop.permute.xlu0 %276
        %278 = vset.pattern.permute.xlu0 0
        %279 = vperm.xlu0 %278, %v237
        %v280 = vpop.permute.xlu0 %279
        %281 = vset.pattern.permute.xlu0 0
        %282 = vperm.xlu0 %281, %v238
        %v283 = vpop.permute.xlu0 %282
        %284 = vset.pattern.permute.xlu0 0
        %285 = vperm.xlu0 %284, %v239
        %v286 = vpop.permute.xlu0 %285
        %287 = vset.pattern.permute.xlu0 0
        %288 = vperm.xlu0 %287, %v240
        %v289 = vpop.permute.xlu0 %288
        %290 = vset.pattern.permute.xlu0 0
        %291 = vperm.xlu0 %290, %v241
        %v292 = vpop.permute.xlu0 %291
        %vm293 = vcmp.eq.s32.totalorder %v243, %v247
        %vm294 = vcmp.eq.s32.totalorder %v244, %v247
        %vm295 = vcmp.eq.s32.totalorder %v243, %v250
        %vm296 = vcmp.eq.s32.totalorder %v244, %v250
        %vm297 = vcmp.eq.s32.totalorder %v243, %v253
        %vm298 = vcmp.eq.s32.totalorder %v244, %v253
        %vm299 = vcmp.eq.s32.totalorder %v243, %v256
        %vm300 = vcmp.eq.s32.totalorder %v244, %v256
        %vm301 = vcmp.eq.s32.totalorder %v243, %v259
        %vm302 = vcmp.eq.s32.totalorder %v244, %v259
        %vm303 = vcmp.eq.s32.totalorder %v243, %v262
        %vm304 = vcmp.eq.s32.totalorder %v244, %v262
        %vm305 = vcmp.eq.s32.totalorder %v243, %v265
        %vm306 = vcmp.eq.s32.totalorder %v244, %v265
        %vm307 = vcmp.eq.s32.totalorder %v243, %v268
        %vm308 = vcmp.eq.s32.totalorder %v244, %v268
        %vm309 = vcmp.eq.s32.totalorder %v243, %v271
        %vm310 = vcmp.eq.s32.totalorder %v244, %v271
        %vm311 = vcmp.eq.s32.totalorder %v243, %v274
        %vm312 = vcmp.eq.s32.totalorder %v244, %v274
        %vm313 = vcmp.eq.s32.totalorder %v243, %v277
        %vm314 = vcmp.eq.s32.totalorder %v244, %v277
        %vm315 = vcmp.eq.s32.totalorder %v243, %v280
        %vm316 = vcmp.eq.s32.totalorder %v244, %v280
        %vm317 = vcmp.eq.s32.totalorder %v243, %v283
        %vm318 = vcmp.eq.s32.totalorder %v244, %v283
        %vm319 = vcmp.eq.s32.totalorder %v243, %v286
        %vm320 = vcmp.eq.s32.totalorder %v244, %v286
        %vm321 = vcmp.eq.s32.totalorder %v243, %v289
        %vm322 = vcmp.eq.s32.totalorder %v244, %v289
        %vm323 = vcmp.eq.s32.totalorder %v243, %v292
        %vm324 = vcmp.eq.s32.totalorder %v244, %v292
        %v325 = vadd.s32 %v226, 128
        %v326 = vadd.s32 %v227, 128
        %v327 = vadd.s32 %v228, 128
        %v328 = vadd.s32 %v229, 128
        %v329 = vadd.s32 %v230, 128
        %v330 = vadd.s32 %v231, 128
        %v331 = vadd.s32 %v232, 128
        %v332 = vadd.s32 %v233, 128
        %v333 = vadd.s32 %v234, 128
        %v334 = vadd.s32 %v235, 128
        %v335 = vadd.s32 %v236, 128
        %v336 = vadd.s32 %v237, 128
        %v337 = vadd.s32 %v238, 128
        %v338 = vadd.s32 %v239, 128
        %v339 = vadd.s32 %v240, 128
        %v340 = vadd.s32 %v241, 128
        %341 = vset.pattern.permute.xlu0 1
        %342 = vperm.xlu0 %341, %v325
        %v343 = vpop.permute.xlu0 %342
        %344 = vset.pattern.permute.xlu0 1
        %345 = vperm.xlu0 %344, %v326
        %v346 = vpop.permute.xlu0 %345
        %347 = vset.pattern.permute.xlu0 1
        %348 = vperm.xlu0 %347, %v327
        %v349 = vpop.permute.xlu0 %348
        %350 = vset.pattern.permute.xlu0 1
        %351 = vperm.xlu0 %350, %v328
        %v352 = vpop.permute.xlu0 %351
        %353 = vset.pattern.permute.xlu0 1
        %354 = vperm.xlu0 %353, %v329
        %v355 = vpop.permute.xlu0 %354
        %356 = vset.pattern.permute.xlu0 1
        %357 = vperm.xlu0 %356, %v330
        %v358 = vpop.permute.xlu0 %357
        %359 = vset.pattern.permute.xlu0 1
        %360 = vperm.xlu0 %359, %v331
        %v361 = vpop.permute.xlu0 %360
        %362 = vset.pattern.permute.xlu0 1
        %363 = vperm.xlu0 %362, %v332
        %v364 = vpop.permute.xlu0 %363
        %365 = vset.pattern.permute.xlu0 1
        %366 = vperm.xlu0 %365, %v333
        %v367 = vpop.permute.xlu0 %366
        %368 = vset.pattern.permute.xlu0 1
        %369 = vperm.xlu0 %368, %v334
        %v370 = vpop.permute.xlu0 %369
        %371 = vset.pattern.permute.xlu0 1
        %372 = vperm.xlu0 %371, %v335
        %v373 = vpop.permute.xlu0 %372
        %374 = vset.pattern.permute.xlu0 1
        %375 = vperm.xlu0 %374, %v336
        %v376 = vpop.permute.xlu0 %375
        %377 = vset.pattern.permute.xlu0 1
        %378 = vperm.xlu0 %377, %v337
        %v379 = vpop.permute.xlu0 %378
        %380 = vset.pattern.permute.xlu0 1
        %381 = vperm.xlu0 %380, %v338
        %v382 = vpop.permute.xlu0 %381
        %383 = vset.pattern.permute.xlu0 1
        %384 = vperm.xlu0 %383, %v339
        %v385 = vpop.permute.xlu0 %384
        %386 = vset.pattern.permute.xlu0 1
        %387 = vperm.xlu0 %386, %v340
        %v388 = vpop.permute.xlu0 %387
        %vm389 = vcmp.eq.s32.totalorder %v243, %v343
        %vm390 = vcmp.eq.s32.totalorder %v244, %v343
        %vm391 = vcmp.eq.s32.totalorder %v243, %v346
        %vm392 = vcmp.eq.s32.totalorder %v244, %v346
        %vm393 = vcmp.eq.s32.totalorder %v243, %v349
        %vm394 = vcmp.eq.s32.totalorder %v244, %v349
        %vm395 = vcmp.eq.s32.totalorder %v243, %v352
        %vm396 = vcmp.eq.s32.totalorder %v244, %v352
        %vm397 = vcmp.eq.s32.totalorder %v243, %v355
        %vm398 = vcmp.eq.s32.totalorder %v244, %v355
        %vm399 = vcmp.eq.s32.totalorder %v243, %v358
        %vm400 = vcmp.eq.s32.totalorder %v244, %v358
        %vm401 = vcmp.eq.s32.totalorder %v243, %v361
        %vm402 = vcmp.eq.s32.totalorder %v244, %v361
        %vm403 = vcmp.eq.s32.totalorder %v243, %v364
        %vm404 = vcmp.eq.s32.totalorder %v244, %v364
        %vm405 = vcmp.eq.s32.totalorder %v243, %v367
        %vm406 = vcmp.eq.s32.totalorder %v244, %v367
        %vm407 = vcmp.eq.s32.totalorder %v243, %v370
        %vm408 = vcmp.eq.s32.totalorder %v244, %v370
        %vm409 = vcmp.eq.s32.totalorder %v243, %v373
        %vm410 = vcmp.eq.s32.totalorder %v244, %v373
        %vm411 = vcmp.eq.s32.totalorder %v243, %v376
        %vm412 = vcmp.eq.s32.totalorder %v244, %v376
        %vm413 = vcmp.eq.s32.totalorder %v243, %v379
        %vm414 = vcmp.eq.s32.totalorder %v244, %v379
        %vm415 = vcmp.eq.s32.totalorder %v243, %v382
        %vm416 = vcmp.eq.s32.totalorder %v244, %v382
        %vm417 = vcmp.eq.s32.totalorder %v243, %v385
        %vm418 = vcmp.eq.s32.totalorder %v244, %v385
        %vm419 = vcmp.eq.s32.totalorder %v243, %v388
        %vm420 = vcmp.eq.s32.totalorder %v244, %v388
        %vm421 = vmor %vm293, %vm389
        %vm422 = vmor %vm294, %vm390
        %vm423 = vmor %vm295, %vm391
        %vm424 = vmor %vm296, %vm392
        %vm425 = vmor %vm297, %vm393
        %vm426 = vmor %vm298, %vm394
        %vm427 = vmor %vm299, %vm395
        %vm428 = vmor %vm300, %vm396
        %vm429 = vmor %vm301, %vm397
        %vm430 = vmor %vm302, %vm398
        %vm431 = vmor %vm303, %vm399
        %vm432 = vmor %vm304, %vm400
        %vm433 = vmor %vm305, %vm401
        %vm434 = vmor %vm306, %vm402
        %vm435 = vmor %vm307, %vm403
        %vm436 = vmor %vm308, %vm404
        %vm437 = vmor %vm309, %vm405
        %vm438 = vmor %vm310, %vm406
        %vm439 = vmor %vm311, %vm407
        %vm440 = vmor %vm312, %vm408
        %vm441 = vmor %vm313, %vm409
        %vm442 = vmor %vm314, %vm410
        %vm443 = vmor %vm315, %vm411
        %vm444 = vmor %vm316, %vm412
        %vm445 = vmor %vm317, %vm413
        %vm446 = vmor %vm318, %vm414
        %vm447 = vmor %vm319, %vm415
        %vm448 = vmor %vm320, %vm416
        %vm449 = vmor %vm321, %vm417
        %vm450 = vmor %vm322, %vm418
        %vm451 = vmor %vm323, %vm419
        %vm452 = vmor %vm324, %vm420
        %v453 = vsel %vm421, 1, 0
        %v454 = vsel %vm422, 1, 0
        %v455 = vsel %vm423, 1, 0
        %v456 = vsel %vm424, 1, 0
        %v457 = vsel %vm425, 1, 0
        %v458 = vsel %vm426, 1, 0
        %v459 = vsel %vm427, 1, 0
        %v460 = vsel %vm428, 1, 0
        %v461 = vsel %vm429, 1, 0
        %v462 = vsel %vm430, 1, 0
        %v463 = vsel %vm431, 1, 0
        %v464 = vsel %vm432, 1, 0
        %v465 = vsel %vm433, 1, 0
        %v466 = vsel %vm434, 1, 0
        %v467 = vsel %vm435, 1, 0
        %v468 = vsel %vm436, 1, 0
        %v469 = vsel %vm437, 1, 0
        %v470 = vsel %vm438, 1, 0
        %v471 = vsel %vm439, 1, 0
        %v472 = vsel %vm440, 1, 0
        %v473 = vsel %vm441, 1, 0
        %v474 = vsel %vm442, 1, 0
        %v475 = vsel %vm443, 1, 0
        %v476 = vsel %vm444, 1, 0
        %v477 = vsel %vm445, 1, 0
        %v478 = vsel %vm446, 1, 0
        %v479 = vsel %vm447, 1, 0
        %v480 = vsel %vm448, 1, 0
        %v481 = vsel %vm449, 1, 0
        %v482 = vsel %vm450, 1, 0
        %v483 = vsel %vm451, 1, 0
        %v484 = vsel %vm452, 1, 0
        %v485 = vcvt.s32.f32 %v453
        %v486 = vcvt.s32.f32 %v454
        %v487 = vcvt.s32.f32 %v455
        %v488 = vcvt.s32.f32 %v456
        %v489 = vcvt.s32.f32 %v457
        %v490 = vcvt.s32.f32 %v458
        %v491 = vcvt.s32.f32 %v459
        %v492 = vcvt.s32.f32 %v460
        %v493 = vcvt.s32.f32 %v461
        %v494 = vcvt.s32.f32 %v462
        %v495 = vcvt.s32.f32 %v463
        %v496 = vcvt.s32.f32 %v464
        %v497 = vcvt.s32.f32 %v465
        %v498 = vcvt.s32.f32 %v466
        %v499 = vcvt.s32.f32 %v467
        %v500 = vcvt.s32.f32 %v468
        %v501 = vcvt.s32.f32 %v469
        %v502 = vcvt.s32.f32 %v470
        %v503 = vcvt.s32.f32 %v471
        %v504 = vcvt.s32.f32 %v472
        %v505 = vcvt.s32.f32 %v473
        %v506 = vcvt.s32.f32 %v474
        %v507 = vcvt.s32.f32 %v475
        %v508 = vcvt.s32.f32 %v476
        %v509 = vcvt.s32.f32 %v477
        %v510 = vcvt.s32.f32 %v478
        %v511 = vcvt.s32.f32 %v479
        %v512 = vcvt.s32.f32 %v480
        %v513 = vcvt.s32.f32 %v481
        %v514 = vcvt.s32.f32 %v482
        %v515 = vcvt.s32.f32 %v483
        %v516 = vcvt.s32.f32 %v484
        %v517 = vpack.c.bf16 %v487, %v485
        %v518 = vpack.c.bf16 %v488, %v486
        %v519 = vpack.c.bf16 %v491, %v489
        %v520 = vpack.c.bf16 %v492, %v490
        %v521 = vpack.c.bf16 %v495, %v493
        %v522 = vpack.c.bf16 %v496, %v494
        %v523 = vpack.c.bf16 %v499, %v497
        %v524 = vpack.c.bf16 %v500, %v498
        %v525 = vpack.c.bf16 %v503, %v501
        %v526 = vpack.c.bf16 %v504, %v502
        %v527 = vpack.c.bf16 %v507, %v505
        %v528 = vpack.c.bf16 %v508, %v506
        %v529 = vpack.c.bf16 %v511, %v509
        %v530 = vpack.c.bf16 %v512, %v510
        %v531 = vpack.c.bf16 %v515, %v513
        %v532 = vpack.c.bf16 %v516, %v514
        %v533 = vld [vmem:[%s1] sm:$0xf]
        %v534 = vld [vmem:[%s1 + $0x4] sm:$0xf]
        %v535 = vld [vmem:[%s1 + $0x8] sm:$0xf]
        %v536 = vld [vmem:[%s1 + $0xc] sm:$0xf]
        %v537 = vld [vmem:[%s1 + $0x10] sm:$0xf]
        %v538 = vld [vmem:[%s1 + $0x14] sm:$0xf]
        %v539 = vld [vmem:[%s1 + $0x18] sm:$0xf]
        %v540 = vld [vmem:[%s1 + $0x1c] sm:$0xf]
        %v541 = vld [vmem:[%s1 + $0x20] sm:$0xf]
        %v542 = vld [vmem:[%s1 + $0x24] sm:$0xf]
        %v543 = vld [vmem:[%s1 + $0x28] sm:$0xf]
        %v544 = vld [vmem:[%s1 + $0x2c] sm:$0xf]
        %v545 = vld [vmem:[%s1 + $0x30] sm:$0xf]
        %v546 = vld [vmem:[%s1 + $0x34] sm:$0xf]
        %v547 = vld [vmem:[%s1 + $0x38] sm:$0xf]
        %v548 = vld [vmem:[%s1 + $0x3c] sm:$0xf]
        %v549 = vld [vmem:[%s1 + $0x40] sm:$0xf]
        %v550 = vld [vmem:[%s1 + $0x44] sm:$0xf]
        %v551 = vld [vmem:[%s1 + $0x48] sm:$0xf]
        %v552 = vld [vmem:[%s1 + $0x4c] sm:$0xf]
        %v553 = vld [vmem:[%s1 + $0x50] sm:$0xf]
        %v554 = vld [vmem:[%s1 + $0x54] sm:$0xf]
        %v555 = vld [vmem:[%s1 + $0x58] sm:$0xf]
        %v556 = vld [vmem:[%s1 + $0x5c] sm:$0xf]
        %v557 = vld [vmem:[%s1 + $0x60] sm:$0xf]
        %v558 = vld [vmem:[%s1 + $0x64] sm:$0xf]
        %v559 = vld [vmem:[%s1 + $0x68] sm:$0xf]
        %v560 = vld [vmem:[%s1 + $0x6c] sm:$0xf]
        %v561 = vld [vmem:[%s1 + $0x70] sm:$0xf]
        %v562 = vld [vmem:[%s1 + $0x74] sm:$0xf]
        %v563 = vld [vmem:[%s1 + $0x78] sm:$0xf]
        %v564 = vld [vmem:[%s1 + $0x7c] sm:$0xf]
        %v565 = vld [vmem:[%s2] sm:$0x1]
        %v567 = vperm.slane %v565, 0
        %v601 = vunpack.c.l.b16 %v533
        %v602 = vunpack.c.l.b16 %v534
        %v603 = vunpack.c.l.b16 %v535
        %v604 = vunpack.c.l.b16 %v536
        %v605 = vunpack.c.l.b16 %v537
        %v606 = vunpack.c.l.b16 %v538
        %v607 = vunpack.c.l.b16 %v539
        %v608 = vunpack.c.l.b16 %v540
        %v609 = vunpack.c.l.b16 %v541
        %v610 = vunpack.c.l.b16 %v542
        %v611 = vunpack.c.l.b16 %v543
        %v612 = vunpack.c.l.b16 %v544
        %v613 = vunpack.c.l.b16 %v545
        %v614 = vunpack.c.l.b16 %v546
        %v615 = vunpack.c.l.b16 %v547
        %v616 = vunpack.c.l.b16 %v548
        %v617 = vunpack.c.l.b16 %v549
        %v618 = vunpack.c.l.b16 %v550
        %v619 = vunpack.c.l.b16 %v551
        %v620 = vunpack.c.l.b16 %v552
        %v621 = vunpack.c.l.b16 %v553
        %v622 = vunpack.c.l.b16 %v554
        %v623 = vunpack.c.l.b16 %v555
        %v624 = vunpack.c.l.b16 %v556
        %v625 = vunpack.c.l.b16 %v557
        %v626 = vunpack.c.l.b16 %v558
        %v627 = vunpack.c.l.b16 %v559
        %v628 = vunpack.c.l.b16 %v560
        %v629 = vunpack.c.l.b16 %v561
        %v630 = vunpack.c.l.b16 %v562
        %v631 = vunpack.c.l.b16 %v563
        %v632 = vunpack.c.l.b16 %v564
        %v633 = vpack.c.b16 %v602, %v601
        %v634 = vpack.c.b16 %v604, %v603
        %v635 = vpack.c.b16 %v606, %v605
        %v636 = vpack.c.b16 %v608, %v607
        %v637 = vpack.c.b16 %v610, %v609
        %v638 = vpack.c.b16 %v612, %v611
        %v639 = vpack.c.b16 %v614, %v613
        %v640 = vpack.c.b16 %v616, %v615
        %v641 = vpack.c.b16 %v618, %v617
        %v642 = vpack.c.b16 %v620, %v619
        %v643 = vpack.c.b16 %v622, %v621
        %v644 = vpack.c.b16 %v624, %v623
        %v645 = vpack.c.b16 %v626, %v625
        %v646 = vpack.c.b16 %v628, %v627
        %v647 = vpack.c.b16 %v630, %v629
        %v648 = vpack.c.b16 %v632, %v631
        %665 = vmatpush.bf16.msra.mxu0 %v640
        %666 = vmatpush.bf16.msra.mxu0 %v639
        %667 = vmatpush.bf16.msra.mxu0 %v638
        %668 = vmatpush.bf16.msra.mxu0 %v637
        %669 = vmatpush.bf16.msra.mxu0 %v636
        %670 = vmatpush.bf16.msra.mxu0 %v635
        %671 = vmatpush.bf16.msra.mxu0 %v634
        %672 = vmatpush.bf16.msra.mxu0 %v633
        %673 = vmatmul.bf16.gmra.mxu0 %v517
        %v674 = vpop.f32.mrf.mxu0
        %v675 = vadd.f32 %v567, %v674
        %v676 = vpop.f32.mrf.mxu0
        %v677 = vadd.f32 %v567, %v676
        %678 = vmatmul.bf16.gmra.mxu0 %v519
        %v679 = vpop.f32.mrf.mxu0
        %v680 = vadd.f32 %v567, %v679
        %v681 = vpop.f32.mrf.mxu0
        %v682 = vadd.f32 %v567, %v681
        %683 = vmatmul.bf16.gmra.mxu0 %v521
        %v684 = vpop.f32.mrf.mxu0
        %v685 = vadd.f32 %v567, %v684
        %v686 = vpop.f32.mrf.mxu0
        %v687 = vadd.f32 %v567, %v686
        %688 = vmatmul.bf16.gmra.mxu0 %v523
        %v689 = vpop.f32.mrf.mxu0
        %v690 = vadd.f32 %v567, %v689
        %v691 = vpop.f32.mrf.mxu0
        %v692 = vadd.f32 %v567, %v691
        %693 = vmatmul.bf16.gmra.mxu0 %v525
        %v694 = vpop.f32.mrf.mxu0
        %v695 = vadd.f32 %v567, %v694
        %v696 = vpop.f32.mrf.mxu0
        %v697 = vadd.f32 %v567, %v696
        %698 = vmatmul.bf16.gmra.mxu0 %v527
        %v699 = vpop.f32.mrf.mxu0
        %v700 = vadd.f32 %v567, %v699
        %v701 = vpop.f32.mrf.mxu0
        %v702 = vadd.f32 %v567, %v701
        %703 = vmatmul.bf16.gmra.mxu0 %v529
        %v704 = vpop.f32.mrf.mxu0
        %v705 = vadd.f32 %v567, %v704
        %v706 = vpop.f32.mrf.mxu0
        %v707 = vadd.f32 %v567, %v706
        %708 = vmatmul.bf16.gmra.mxu0 %v531
        %v709 = vpop.f32.mrf.mxu0
        %v710 = vadd.f32 %v567, %v709
        %v711 = vpop.f32.mrf.mxu0
        %v712 = vadd.f32 %v567, %v711
        %713 = vdwg.mxu0
        %714 = vmatpush.bf16.msra.mxu0 %v648
        %715 = vmatpush.bf16.msra.mxu0 %v647
        %716 = vmatpush.bf16.msra.mxu0 %v646
        %717 = vmatpush.bf16.msra.mxu0 %v645
        %718 = vmatpush.bf16.msra.mxu0 %v644
        %719 = vmatpush.bf16.msra.mxu0 %v643
        %720 = vmatpush.bf16.msra.mxu0 %v642
        %721 = vmatpush.bf16.msra.mxu0 %v641
        %722 = vmatmul.bf16.gmra.mxu0 %v518
        %v723 = vpop.f32.mrf.mxu0
        %v724 = vadd.f32 %v675, %v723
        %v725 = vpop.f32.mrf.mxu0
        %v726 = vadd.f32 %v677, %v725
        %727 = vmatmul.bf16.gmra.mxu0 %v520
        %v728 = vpop.f32.mrf.mxu0
        %v729 = vadd.f32 %v680, %v728
        %v730 = vpop.f32.mrf.mxu0
        %v731 = vadd.f32 %v682, %v730
        %732 = vmatmul.bf16.gmra.mxu0 %v522
        %v733 = vpop.f32.mrf.mxu0
        %v734 = vadd.f32 %v685, %v733
        %v735 = vpop.f32.mrf.mxu0
        %v736 = vadd.f32 %v687, %v735
        %737 = vmatmul.bf16.gmra.mxu0 %v524
        %v738 = vpop.f32.mrf.mxu0
        %v739 = vadd.f32 %v690, %v738
        %v740 = vpop.f32.mrf.mxu0
        %v741 = vadd.f32 %v692, %v740
        %742 = vmatmul.bf16.gmra.mxu0 %v526
        %v743 = vpop.f32.mrf.mxu0
        %v744 = vadd.f32 %v695, %v743
        %v745 = vpop.f32.mrf.mxu0
        %v746 = vadd.f32 %v697, %v745
        %747 = vmatmul.bf16.gmra.mxu0 %v528
        %v748 = vpop.f32.mrf.mxu0
        %v749 = vadd.f32 %v700, %v748
        %v750 = vpop.f32.mrf.mxu0
        %v751 = vadd.f32 %v702, %v750
        %752 = vmatmul.bf16.gmra.mxu0 %v530
        %v753 = vpop.f32.mrf.mxu0
        %v754 = vadd.f32 %v705, %v753
        %v755 = vpop.f32.mrf.mxu0
        %v756 = vadd.f32 %v707, %v755
        %757 = vmatmul.bf16.gmra.mxu0 %v532
        %v758 = vpop.f32.mrf.mxu0
        %v759 = vadd.f32 %v710, %v758
        %v760 = vpop.f32.mrf.mxu0
        %v761 = vadd.f32 %v712, %v760
        %762 = vdwg.mxu0
        %v763 = vmax.f32 %v724, 0.0
        %v764 = vmax.f32 %v726, 0.0
        %v765 = vmax.f32 %v729, 0.0
        %v766 = vmax.f32 %v731, 0.0
        %v767 = vmax.f32 %v734, 0.0
        %v768 = vmax.f32 %v736, 0.0
        %v769 = vmax.f32 %v739, 0.0
        %v770 = vmax.f32 %v741, 0.0
        %v771 = vmax.f32 %v744, 0.0
        %v772 = vmax.f32 %v746, 0.0
        %v773 = vmax.f32 %v749, 0.0
        %v774 = vmax.f32 %v751, 0.0
        %v775 = vmax.f32 %v754, 0.0
        %v776 = vmax.f32 %v756, 0.0
        %v777 = vmax.f32 %v759, 0.0
        %v778 = vmax.f32 %v761, 0.0
        %v779 = vpack.c.bf16 %v764, %v763
        %v780 = vpack.c.bf16 %v766, %v765
        %v781 = vpack.c.bf16 %v768, %v767
        %v782 = vpack.c.bf16 %v770, %v769
        %v783 = vpack.c.bf16 %v772, %v771
        %v784 = vpack.c.bf16 %v774, %v773
        %v785 = vpack.c.bf16 %v776, %v775
        %v786 = vpack.c.bf16 %v778, %v777
        %v787 = vld [vmem:[%s3] sm:$0xf]
        %v788 = vld [vmem:[%s3 + $0x4] sm:$0xf]
        %v789 = vld [vmem:[%s3 + $0x8] sm:$0xf]
        %v790 = vld [vmem:[%s3 + $0xc] sm:$0xf]
        %v791 = vld [vmem:[%s3 + $0x10] sm:$0xf]
        %v792 = vld [vmem:[%s3 + $0x14] sm:$0xf]
        %v793 = vld [vmem:[%s3 + $0x18] sm:$0xf]
        %v794 = vld [vmem:[%s3 + $0x1c] sm:$0xf]
        %v795 = vld [vmem:[%s3 + $0x20] sm:$0xf]
        %v796 = vld [vmem:[%s3 + $0x24] sm:$0xf]
        %v797 = vld [vmem:[%s3 + $0x28] sm:$0xf]
        %v798 = vld [vmem:[%s3 + $0x2c] sm:$0xf]
        %v799 = vld [vmem:[%s3 + $0x30] sm:$0xf]
        %v800 = vld [vmem:[%s3 + $0x34] sm:$0xf]
        %v801 = vld [vmem:[%s3 + $0x38] sm:$0xf]
        %v802 = vld [vmem:[%s3 + $0x3c] sm:$0xf]
        %v803 = vld [vmem:[%s4] sm:$0x1]
        %v805 = vperm.slane %v803, 0
        %v823 = vunpack.c.l.b16 %v787
        %v824 = vunpack.c.l.b16 %v788
        %v825 = vunpack.c.l.b16 %v789
        %v826 = vunpack.c.l.b16 %v790
        %v827 = vunpack.c.l.b16 %v791
        %v828 = vunpack.c.l.b16 %v792
        %v829 = vunpack.c.l.b16 %v793
        %v830 = vunpack.c.l.b16 %v794
        %v831 = vunpack.c.l.b16 %v795
        %v832 = vunpack.c.l.b16 %v796
        %v833 = vunpack.c.l.b16 %v797
        %v834 = vunpack.c.l.b16 %v798
        %v835 = vunpack.c.l.b16 %v799
        %v836 = vunpack.c.l.b16 %v800
        %v837 = vunpack.c.l.b16 %v801
        %v838 = vunpack.c.l.b16 %v802
        %v839 = vpack.c.b16 %v824, %v823
        %v840 = vpack.c.b16 %v826, %v825
        %v841 = vpack.c.b16 %v828, %v827
        %v842 = vpack.c.b16 %v830, %v829
        %v843 = vpack.c.b16 %v832, %v831
        %v844 = vpack.c.b16 %v834, %v833
        %v845 = vpack.c.b16 %v836, %v835
        %v846 = vpack.c.b16 %v838, %v837
        %855 = vmatpush.bf16.msra.mxu0 %v846
        %856 = vmatpush.bf16.msra.mxu0 %v845
        %857 = vmatpush.bf16.msra.mxu0 %v844
        %858 = vmatpush.bf16.msra.mxu0 %v843
        %859 = vmatpush.bf16.msra.mxu0 %v842
        %860 = vmatpush.bf16.msra.mxu0 %v841
        %861 = vmatpush.bf16.msra.mxu0 %v840
        %862 = vmatpush.bf16.msra.mxu0 %v839
        %863 = vmatmul.bf16.gmra.mxu0 %v779
        %v864 = vpop.f32.mrf.mxu0
        %v865 = vadd.f32 %v805, %v864
        %v866 = vpop.f32.mrf.mxu0
        %v867 = vadd.f32 %v805, %v866
        %868 = vmatmul.bf16.gmra.mxu0 %v780
        %v869 = vpop.f32.mrf.mxu0
        %v870 = vadd.f32 %v805, %v869
        %v871 = vpop.f32.mrf.mxu0
        %v872 = vadd.f32 %v805, %v871
        %873 = vmatmul.bf16.gmra.mxu0 %v781
        %v874 = vpop.f32.mrf.mxu0
        %v875 = vadd.f32 %v805, %v874
        %v876 = vpop.f32.mrf.mxu0
        %v877 = vadd.f32 %v805, %v876
        %878 = vmatmul.bf16.gmra.mxu0 %v782
        %v879 = vpop.f32.mrf.mxu0
        %v880 = vadd.f32 %v805, %v879
        %v881 = vpop.f32.mrf.mxu0
        %v882 = vadd.f32 %v805, %v881
        %883 = vmatmul.bf16.gmra.mxu0 %v783
        %v884 = vpop.f32.mrf.mxu0
        %v885 = vadd.f32 %v805, %v884
        %v886 = vpop.f32.mrf.mxu0
        %v887 = vadd.f32 %v805, %v886
        %888 = vmatmul.bf16.gmra.mxu0 %v784
        %v889 = vpop.f32.mrf.mxu0
        %v890 = vadd.f32 %v805, %v889
        %v891 = vpop.f32.mrf.mxu0
        %v892 = vadd.f32 %v805, %v891
        %893 = vmatmul.bf16.gmra.mxu0 %v785
        %v894 = vpop.f32.mrf.mxu0
        %v895 = vadd.f32 %v805, %v894
        %v896 = vpop.f32.mrf.mxu0
        %v897 = vadd.f32 %v805, %v896
        %898 = vmatmul.bf16.gmra.mxu0 %v786
        %v899 = vpop.f32.mrf.mxu0
        %v900 = vadd.f32 %v805, %v899
        %v901 = vpop.f32.mrf.mxu0
        %v902 = vadd.f32 %v805, %v901
        %903 = vdwg.mxu0
        %904 = vmax.xlane.f32.xlu0 %v865
        %v905 = vpop.xlane.xlu0 %904
        %906 = vmax.xlane.f32.xlu0 %v867
        %v907 = vpop.xlane.xlu0 %906
        %908 = vmax.xlane.f32.xlu0 %v870
        %v909 = vpop.xlane.xlu0 %908
        %910 = vmax.xlane.f32.xlu0 %v872
        %v911 = vpop.xlane.xlu0 %910
        %912 = vmax.xlane.f32.xlu0 %v875
        %v913 = vpop.xlane.xlu0 %912
        %914 = vmax.xlane.f32.xlu0 %v877
        %v915 = vpop.xlane.xlu0 %914
        %916 = vmax.xlane.f32.xlu0 %v880
        %v917 = vpop.xlane.xlu0 %916
        %918 = vmax.xlane.f32.xlu0 %v882
        %v919 = vpop.xlane.xlu0 %918
        %920 = vmax.xlane.f32.xlu0 %v885
        %v921 = vpop.xlane.xlu0 %920
        %922 = vmax.xlane.f32.xlu0 %v887
        %v923 = vpop.xlane.xlu0 %922
        %924 = vmax.xlane.f32.xlu0 %v890
        %v925 = vpop.xlane.xlu0 %924
        %926 = vmax.xlane.f32.xlu0 %v892
        %v927 = vpop.xlane.xlu0 %926
        %928 = vmax.xlane.f32.xlu0 %v895
        %v929 = vpop.xlane.xlu0 %928
        %930 = vmax.xlane.f32.xlu0 %v897
        %v931 = vpop.xlane.xlu0 %930
        %932 = vmax.xlane.f32.xlu0 %v900
        %v933 = vpop.xlane.xlu0 %932
        %934 = vmax.xlane.f32.xlu0 %v902
        %v935 = vpop.xlane.xlu0 %934
        %v936 = vsub.f32 %v865, %v905
        %v937 = vsub.f32 %v867, %v907
        %v938 = vsub.f32 %v870, %v909
        %v939 = vsub.f32 %v872, %v911
        %v940 = vsub.f32 %v875, %v913
        %v941 = vsub.f32 %v877, %v915
        %v942 = vsub.f32 %v880, %v917
        %v943 = vsub.f32 %v882, %v919
        %v944 = vsub.f32 %v885, %v921
        %v945 = vsub.f32 %v887, %v923
        %v946 = vsub.f32 %v890, %v925
        %v947 = vsub.f32 %v892, %v927
        %v948 = vsub.f32 %v895, %v929
        %v949 = vsub.f32 %v897, %v931
        %v950 = vsub.f32 %v900, %v933
        %v951 = vsub.f32 %v902, %v935
        %v952 = vmul.f32 %v936, 1.442695
        %v953 = vpow.pop %v952
        %v954 = vmul.f32 %v937, 1.442695
        %v955 = vpow.pop %v954
        %v956 = vmul.f32 %v938, 1.442695
        %v957 = vpow.pop %v956
        %v958 = vmul.f32 %v939, 1.442695
        %v959 = vpow.pop %v958
        %v960 = vmul.f32 %v940, 1.442695
        %v961 = vpow.pop %v960
        %v962 = vmul.f32 %v941, 1.442695
        %v963 = vpow.pop %v962
        %v964 = vmul.f32 %v942, 1.442695
        %v965 = vpow.pop %v964
        %v966 = vmul.f32 %v943, 1.442695
        %v967 = vpow.pop %v966
        %v968 = vmul.f32 %v944, 1.442695
        %v969 = vpow.pop %v968
        %v970 = vmul.f32 %v945, 1.442695
        %v971 = vpow.pop %v970
        %v972 = vmul.f32 %v946, 1.442695
        %v973 = vpow.pop %v972
        %v974 = vmul.f32 %v947, 1.442695
        %v975 = vpow.pop %v974
        %v976 = vmul.f32 %v948, 1.442695
        %v977 = vpow.pop %v976
        %v978 = vmul.f32 %v949, 1.442695
        %v979 = vpow.pop %v978
        %v980 = vmul.f32 %v950, 1.442695
        %v981 = vpow.pop %v980
        %v982 = vmul.f32 %v951, 1.442695
        %v983 = vpow.pop %v982
        %984 = vadd.xlane.f32.xlu0 %v953
        %v985 = vpop.xlane.xlu0 %984
        %986 = vadd.xlane.f32.xlu0 %v955
        %v987 = vpop.xlane.xlu0 %986
        %988 = vadd.xlane.f32.xlu0 %v957
        %v989 = vpop.xlane.xlu0 %988
        %990 = vadd.xlane.f32.xlu0 %v959
        %v991 = vpop.xlane.xlu0 %990
        %992 = vadd.xlane.f32.xlu0 %v961
        %v993 = vpop.xlane.xlu0 %992
        %994 = vadd.xlane.f32.xlu0 %v963
        %v995 = vpop.xlane.xlu0 %994
        %996 = vadd.xlane.f32.xlu0 %v965
        %v997 = vpop.xlane.xlu0 %996
        %998 = vadd.xlane.f32.xlu0 %v967
        %v999 = vpop.xlane.xlu0 %998
        %1000 = vadd.xlane.f32.xlu0 %v969
        %v1001 = vpop.xlane.xlu0 %1000
        %1002 = vadd.xlane.f32.xlu0 %v971
        %v1003 = vpop.xlane.xlu0 %1002
        %1004 = vadd.xlane.f32.xlu0 %v973
        %v1005 = vpop.xlane.xlu0 %1004
        %1006 = vadd.xlane.f32.xlu0 %v975
        %v1007 = vpop.xlane.xlu0 %1006
        %1008 = vadd.xlane.f32.xlu0 %v977
        %v1009 = vpop.xlane.xlu0 %1008
        %1010 = vadd.xlane.f32.xlu0 %v979
        %v1011 = vpop.xlane.xlu0 %1010
        %1012 = vadd.xlane.f32.xlu0 %v981
        %v1013 = vpop.xlane.xlu0 %1012
        %1014 = vadd.xlane.f32.xlu0 %v983
        %v1015 = vpop.xlane.xlu0 %1014
        %v1016 = vlog2.pop %v985
        %v1017 = vmul.f32 %v1016, 0.6931472
        %v1018 = vlog2.pop %v987
        %v1019 = vmul.f32 %v1018, 0.6931472
        %v1020 = vlog2.pop %v989
        %v1021 = vmul.f32 %v1020, 0.6931472
        %v1022 = vlog2.pop %v991
        %v1023 = vmul.f32 %v1022, 0.6931472
        %v1024 = vlog2.pop %v993
        %v1025 = vmul.f32 %v1024, 0.6931472
        %v1026 = vlog2.pop %v995
        %v1027 = vmul.f32 %v1026, 0.6931472
        %v1028 = vlog2.pop %v997
        %v1029 = vmul.f32 %v1028, 0.6931472
        %v1030 = vlog2.pop %v999
        %v1031 = vmul.f32 %v1030, 0.6931472
        %v1032 = vlog2.pop %v1001
        %v1033 = vmul.f32 %v1032, 0.6931472
        %v1034 = vlog2.pop %v1003
        %v1035 = vmul.f32 %v1034, 0.6931472
        %v1036 = vlog2.pop %v1005
        %v1037 = vmul.f32 %v1036, 0.6931472
        %v1038 = vlog2.pop %v1007
        %v1039 = vmul.f32 %v1038, 0.6931472
        %v1040 = vlog2.pop %v1009
        %v1041 = vmul.f32 %v1040, 0.6931472
        %v1042 = vlog2.pop %v1011
        %v1043 = vmul.f32 %v1042, 0.6931472
        %v1044 = vlog2.pop %v1013
        %v1045 = vmul.f32 %v1044, 0.6931472
        %v1046 = vlog2.pop %v1015
        %v1047 = vmul.f32 %v1046, 0.6931472
        %v1048 = vsub.f32 %v936, %v1017
        %v1049 = vsub.f32 %v937, %v1019
        %v1050 = vsub.f32 %v938, %v1021
        %v1051 = vsub.f32 %v939, %v1023
        %v1052 = vsub.f32 %v940, %v1025
        %v1053 = vsub.f32 %v941, %v1027
        %v1054 = vsub.f32 %v942, %v1029
        %v1055 = vsub.f32 %v943, %v1031
        %v1056 = vsub.f32 %v944, %v1033
        %v1057 = vsub.f32 %v945, %v1035
        %v1058 = vsub.f32 %v946, %v1037
        %v1059 = vsub.f32 %v947, %v1039
        %v1060 = vsub.f32 %v948, %v1041
        %v1061 = vsub.f32 %v949, %v1043
        %v1062 = vsub.f32 %v950, %v1045
        %v1063 = vsub.f32 %v951, %v1047
        %1064 = vst [vmem:[%s218] sm:$0xff] %v1048
        %1065 = vst [vmem:[%s218 + $0x8] sm:$0xff] %v1049
        %1066 = vst [vmem:[%s218 + $0x10] sm:$0xff] %v1050
        %1067 = vst [vmem:[%s218 + $0x18] sm:$0xff] %v1051
        %1068 = vst [vmem:[%s218 + $0x20] sm:$0xff] %v1052
        %1069 = vst [vmem:[%s218 + $0x28] sm:$0xff] %v1053
        %1070 = vst [vmem:[%s218 + $0x30] sm:$0xff] %v1054
        %1071 = vst [vmem:[%s218 + $0x38] sm:$0xff] %v1055
        %1072 = vst [vmem:[%s218 + $0x40] sm:$0xff] %v1056
        %1073 = vst [vmem:[%s218 + $0x48] sm:$0xff] %v1057
        %1074 = vst [vmem:[%s218 + $0x50] sm:$0xff] %v1058
        %1075 = vst [vmem:[%s218 + $0x58] sm:$0xff] %v1059
        %1076 = vst [vmem:[%s218 + $0x60] sm:$0xff] %v1060
        %1077 = vst [vmem:[%s218 + $0x68] sm:$0xff] %v1061
        %1078 = vst [vmem:[%s218 + $0x70] sm:$0xff] %v1062
        %1079 = vst [vmem:[%s218 + $0x78] sm:$0xff] %v1063
        %s1080 = sand.u32 %s137, 1
        %s1081 = scalar_lea.sflag [#allocation3], %s1080
        %s1082 = sand.u32 %s137, 1
        %s1083 = smul.addr %s1082, 128
        %s1084 = scalar_lea.vmem [#allocation2], %s1083
        // Predicated region
        $region41: #{ngram_forward.1} parent=39 // pred_check
          %p1085 = pneg %p147
        $region42: #{ngram_forward.1} parent=39 // pred_check_branch
          %1087 = sbr.rel (%p1085) target = $region44
        $region43: #{ngram_forward.1} parent=39 // pred_region
          %s1088 = smul.u32 16, %s19
          %1090 = vsyncadd %s1081, 0
          %s1091 = smul.addr %s1088, 8
          %s1092 = scalar_lea.hbm %s5, %s1091
          %s1093 = sshll.u32 %s1084, 4
          %s1094 = int_to_ptr.vmem [resolvable:$true] %s1093
          %s1095 = sshll.u32 %s1092, 4
          %s1096 = int_to_ptr.hbm [resolvable:$true] %s1095
          %1101 = dma.vmem_to_hbm [thread:$0]  %s1094, 2048, %s1096, %s1081, 128, 128, 8
        $region44: #{ngram_forward.1} parent=39 // pred_fallthru
          _
      $region40: #{ngram_forward.1} parent=5 // pred_fallthru
        _
      %p1102 = scmp.le.s32.totalorder 2, %s14
      // Predicated region
      $region45: #{ngram_forward.1} parent=5 // pred_check
        %p1103 = pneg %p1102
      $region46: #{ngram_forward.1} parent=5 // pred_check_branch
        %1105 = sbr.rel (%p1103) target = $region48
      $region47: #{ngram_forward.1} parent=5 // pred_region
        %s1106 = ssub.s32 %s14, 2
        // Predicated region
        $region49: #{ngram_forward.1} parent=47 // pred_check
          %p1107 = pneg %p153
        $region50: #{ngram_forward.1} parent=47 // pred_check_branch
          %1109 = sbr.rel (%p1107) target = $region52
        $region51: #{ngram_forward.1} parent=47 // pred_region
          %s1110 = sand.u32 %s138, 1
          %s1111 = scalar_lea.sflag [#allocation3], %s1110
          %s1112 = sand.u32 %s138, 1
          %s1113 = smul.addr %s1112, 128
          %s1114 = scalar_lea.vmem [#allocation2], %s1113
          %1116 = dma.done %s1111, 2048
        $region52: #{ngram_forward.1} parent=47 // pred_fallthru
          _
      $region48: #{ngram_forward.1} parent=5 // pred_fallthru
        _
    $region6: #{ngram_forward.1} parent=1 // loop_footer
      %s18 = sadd.s32 1, %s14
    $region7: #{ngram_forward.1} parent=1 // loop_footer_branch
      %13 = sbr.rel target = $region3
    $region8: #{ngram_forward.1} parent=1 // loop_exit
      _
    %1117 = vsyncpa [#allocation3], 1
    %s1118 = scalar_lea.sflag [#allocation3], 1
    %1119 = vsyncpa %s1118, 1

</llo_original>
